<compile_context>
chip_gen: v7x
topology: tpu7x:2x2x1
jax: 0.10.0
libtpu: 0.0.40
codegen_flags: <defaults>
</compile_context>

<pallas_src>
import math

import jax
import jax.numpy as jnp
from jax.experimental import pallas as pl
from jax.experimental.pallas import tpu as pltpu


_SQRT1_2 = 1.0 / math.sqrt(2.0)


def _round_up(x, m):
    return ((x + m - 1) // m) * m


def _vmem_cap_bytes():
    """75% of physical VMEM (leaves compiler scratch headroom); v7x-safe fallback."""
    try:
        cap = int(pltpu.get_tpu_info().vmem_capacity_bytes) * 3 // 4
    except Exception:
        cap = 48 * 1024 * 1024
    return max(cap, 32 * 1024 * 1024)


def _geglu_kernel(x_ref, w_ref, b_ref, o_ref):
    # x_ref: (tile_m, dim_in)           compute dtype (bf16 or f32)
    # w_ref: (dim_in, 2*tn)             packed [value_cols(tn) | gate_cols(tn)]
    # b_ref: (1, 2*tn)                  float32
    # o_ref: (tile_m, tn)
    tn = o_ref.shape[-1]
    # One fused MXU matmul for value+gate halves, f32 accumulation.
    s = jnp.dot(x_ref[...], w_ref[...], preferred_element_type=jnp.float32)
    s = s + b_ref[...]
    h = s[:, :tn]      # value half  (split lands on a 128-lane boundary)
    g = s[:, tn:]      # gate half
    # Exact erf GELU (matches torch.nn.functional.gelu default), f32 epilogue.
    gelu_g = 0.5 * g * (1.0 + jax.lax.erf(g * _SQRT1_2))
    o_ref[...] = (h * gelu_g).astype(o_ref.dtype)


def pack_geglu_params(weight, bias, *, tn=None, compute_dtype=jnp.bfloat16):
    """Pre-pack nn.Linear(dim_in, 2*dim_out) params for the fused kernel.

    Call ONCE at model load (hoisted out of the per-call hot path).

    weight: (2*dim_out, dim_in)  -- PyTorch nn.Linear weight layout
    bias:   (2*dim_out,)
    compute_dtype: dtype for x/W on the MXU (default bf16; use jnp.float32 for
                   exact torch parity).  Accumulation + epilogue are always f32.
    Returns (w_packed, b_packed, dim_out, tn):
      w_packed: (dim_in, grid_n * 2 * tn), column blocks [value_j | gate_j]
      b_packed: (1, grid_n * 2 * tn) float32
    """
    two_dim_out, dim_in = weight.shape
    dim_out = two_dim_out // 2

    w_dtype = jnp.dtype(compute_dtype if compute_dtype is not None else weight.dtype)

    # Lane-dense output width: pad dim_out up to a multiple of 128.
    dim_out_p = max(_round_up(dim_out, 128), 128)
    if tn is None:
        # Aim for N tiles of <=1024 with minimal padding waste.
        grid_n_target = pl.cdiv(dim_out_p, 1024)
        tn = _round_up(pl.cdiv(dim_out_p, grid_n_target), 128)
        # f32 weights + large dim_in: shrink tn so 2x-buffered W block fits v7x VMEM.
        if w_dtype.itemsize >= 4 and dim_in >= 2048:
            tn = min(tn, 512)
    tn = _round_up(tn, 128)
    grid_n = pl.cdiv(dim_out_p, tn)
    dim_out_pad = grid_n * tn

    wx = weight[:dim_out, :].T.astype(w_dtype)   # (dim_in, dim_out) value half
    wg = weight[dim_out:, :].T.astype(w_dtype)   # (dim_in, dim_out) gate half
    pad = dim_out_pad - dim_out
    wx = jnp.pad(wx, ((0, 0), (0, pad)))
    wg = jnp.pad(wg, ((0, 0), (0, pad)))
    # Interleave per-output-tile column blocks: [.., value_j(tn), gate_j(tn), ..]
    w_packed = jnp.concatenate(
        [wx.reshape(dim_in, grid_n, 1, tn), wg.reshape(dim_in, grid_n, 1, tn)],
        axis=2,
    ).reshape(dim_in, grid_n * 2 * tn)

    bx = jnp.pad(bias[:dim_out].astype(jnp.float32), (0, pad))
    bg = jnp.pad(bias[dim_out:].astype(jnp.float32), (0, pad))
    b_packed = jnp.concatenate(
        [bx.reshape(grid_n, 1, tn), bg.reshape(grid_n, 1, tn)], axis=1
    ).reshape(1, grid_n * 2 * tn)

    return w_packed, b_packed, dim_out, tn


def geglu_packed(x, w_packed, b_packed, dim_out, tn, *, tile_m=None):
    """GEGLU forward with pre-packed weights.  x: (..., dim_in) -> (..., dim_out)."""
    *lead, dim_in = x.shape
    assert w_packed.shape[0] == dim_in
    grid_n = w_packed.shape[1] // (2 * tn)
    dim_out_pad = grid_n * tn

    m = 1
    for d in lead:
        m *= d
    x2 = x.reshape(m, dim_in)
    # Matmul operands share a dtype (bf16 MXU path when weights were packed bf16).
    if x2.dtype != w_packed.dtype:
        x2 = x2.astype(w_packed.dtype)
    out_dtype = x.dtype

    vmem_cap = _vmem_cap_bytes()

    # M tiling.  Multiple-of-16 tiles for sub-32-bit compute (sublane packing),
    # multiple-of-8 for f32.  Ragged last block is allowed (no host-side pad):
    # OOB rows feed only an elementwise epilogue and are discarded on write.
    gran = 16 if jnp.dtype(x2.dtype).itemsize < 4 else 8
    if tile_m is None:
        tile_m = 512 if vmem_cap >= 96 * 1024 * 1024 else 256   # v5e/v6e vs v7x
    tile_m = min(_round_up(tile_m, gran), _round_up(m, gran))
    grid_m = pl.cdiv(m, tile_m)

    # VMEM budget: double-buffered x / W / bias / out blocks + the f32 matmul
    # intermediate and epilogue temps the compiler materializes.
    x_isz = jnp.dtype(x2.dtype).itemsize
    w_isz = jnp.dtype(w_packed.dtype).itemsize
    o_isz = jnp.dtype(out_dtype).itemsize
    vmem_needed = (
        2 * tile_m * dim_in * x_isz          # x blocks (double-buffered)
        + 2 * dim_in * 2 * tn * w_isz        # packed W blocks
        + 2 * 2 * tn * 4                     # bias blocks
        + 2 * tile_m * tn * o_isz            # output blocks
        + tile_m * 2 * tn * 4                # f32 matmul result 's'
        + 2 * tile_m * tn * 4                # f32 epilogue temps
    )
    vmem_limit = int(min(max(int(vmem_needed * 1.5), 32 * 1024 * 1024), vmem_cap))

    # Grid order: j (weight/output column block) is the SLOW axis, i (M block) the
    # FAST axis -> W block index is constant across all inner M steps, so the big
    # weight DMA happens once per j (whole W read from HBM exactly once).
    out = pl.pallas_call(
        _geglu_kernel,
        out_shape=jax.ShapeDtypeStruct((m, dim_out_pad), out_dtype),
        grid_spec=pltpu.PrefetchScalarGridSpec(
            num_scalar_prefetch=0,
            grid=(grid_n, grid_m),
            in_specs=[
                pl.BlockSpec((tile_m, dim_in), lambda j, i: (i, 0)),    # x tile
                pl.BlockSpec((dim_in, 2 * tn), lambda j, i: (0, j)),    # packed W tile
                pl.BlockSpec((1, 2 * tn), lambda j, i: (0, j)),         # packed bias
            ],
            out_specs=pl.BlockSpec((tile_m, tn), lambda j, i: (i, j)),
        ),
        compiler_params=pltpu.CompilerParams(
            dimension_semantics=("parallel", "parallel"),
            vmem_limit_bytes=vmem_limit,
        ),
    )(x2, w_packed, b_packed)

    if dim_out_pad != dim_out:
        out = out[:, :dim_out]
    return out.reshape(*lead, dim_out)


def geglu(x, weight, bias, *, tile_m=None, tn=None, compute_dtype=jnp.bfloat16):
    """Convenience wrapper.  Prefer pack_geglu_params() once + geglu_packed() per call."""
    w_packed, b_packed, dim_out, tn = pack_geglu_params(
        weight, bias, tn=tn, compute_dtype=compute_dtype
    )
    return geglu_packed(x, w_packed, b_packed, dim_out, tn, tile_m=tile_m)


def _geglu_ref(x, weight, bias):
    dim_out = weight.shape[0] // 2
    proj = jnp.einsum("...i,oi->...o", x, weight) + bias
    h, g = proj[..., :dim_out], proj[..., dim_out:]
    return h * (0.5 * g * (1.0 + jax.lax.erf(g * _SQRT1_2)))


if __name__ == "__main__":
    # GEGLU(dim_in, dim_out) with x of shape (batch, seq, dim_in).
    batch, seq, dim_in, dim_out = 2, 64, 32, 64

    key = jax.random.PRNGKey(0)
    kx, kw, kb = jax.random.split(key, 3)

    x = jax.random.normal(kx, (batch, seq, dim_in), dtype=jnp.float32)

    # Deterministic nn.Linear-style init: U(-1/sqrt(dim_in), 1/sqrt(dim_in)).
    bound = 1.0 / math.sqrt(dim_in)
    weight = jax.random.uniform(
        kw, (2 * dim_out, dim_in), dtype=jnp.float32, minval=-bound, maxval=bound
    )
    bias = jax.random.uniform(
        kb, (2 * dim_out,), dtype=jnp.float32, minval=-bound, maxval=bound
    )

    ref = _geglu_ref(x, weight, bias)

    # ---- f32 compute path: exact erf-GELU parity with the PyTorch reference ----
    w32, b32, d_out, tn32 = pack_geglu_params(weight, bias, compute_dtype=jnp.float32)
    out_f32 = geglu_packed(x, w32, b32, d_out, tn32, tile_m=64)  # grid_m=2 at demo size
    out_f32 = jax.block_until_ready(out_f32)
    assert out_f32.shape == (batch, seq, dim_out)
    assert jnp.allclose(out_f32, ref, atol=1e-5, rtol=1e-5), "f32 path mismatch"

    # ---- default bf16 compute path (f32 accumulation + f32 erf epilogue) ----
    wbf, bbf, d_out2, tnbf = pack_geglu_params(weight, bias)     # bf16 default
    out_bf16 = geglu_packed(x, wbf, bbf, d_out2, tnbf, tile_m=64)
    out_bf16 = jax.block_until_ready(out_bf16)
    assert out_bf16.shape == (batch, seq, dim_out)
    assert jnp.allclose(out_bf16, ref, atol=3e-2, rtol=3e-2), "bf16 path mismatch"

    print("KERNEL_OK")
</pallas_src>

<mosaic_0001>
module attributes {stable_mosaic.version = 11 : i64} {
  func.func @_geglu_kernel(%arg0: i32, %arg1: i32, %arg2: memref<64x32xf32, #tpu.memory_space<vmem>>, %arg3: memref<32x256xf32, #tpu.memory_space<vmem>>, %arg4: memref<1x256xf32, #tpu.memory_space<vmem>>, %arg5: memref<64x128xf32, #tpu.memory_space<vmem>>) attributes {dimension_semantics = [#tpu.dimension_semantics<parallel>, #tpu.dimension_semantics<parallel>], iteration_bounds = array<i64: 1, 2>, scalar_prefetch = 0 : i64, scratch_operands = 0 : i64, tpu.core_type = #tpu.core_type<tc>, window_params = [{transform_indices = @transform_0, window_bounds = array<i64: 64, 32>}, {transform_indices = @transform_1, window_bounds = array<i64: 32, 256>}, {transform_indices = @transform_2, window_bounds = array<i64: 1, 256>}, {transform_indices = @transform_3, window_bounds = array<i64: 64, 128>}]} {
    %c0 = arith.constant 0 : index
    %c0_0 = arith.constant 0 : index
    %0 = vector.load %arg2[%c0, %c0_0] : memref<64x32xf32, #tpu.memory_space<vmem>>, vector<64x32xf32>
    %c0_1 = arith.constant 0 : index
    %c0_2 = arith.constant 0 : index
    %1 = vector.load %arg3[%c0_1, %c0_2] : memref<32x256xf32, #tpu.memory_space<vmem>>, vector<32x256xf32>
    %cst = arith.constant dense<0.000000e+00> : vector<64x256xf32>
    %2 = tpu.matmul %0, %1, %cst {dimension_numbers = #tpu.dot_dimension_numbers<[1], [0], [0], [1], [0, 0, 1, 1], [], []>} : vector<64x32xf32>, vector<32x256xf32>, vector<64x256xf32> -> vector<64x256xf32>
    %c0_3 = arith.constant 0 : index
    %c0_4 = arith.constant 0 : index
    %3 = vector.load %arg4[%c0_3, %c0_4] : memref<1x256xf32, #tpu.memory_space<vmem>>, vector<1x256xf32>
    %4 = vector.broadcast %3 : vector<1x256xf32> to vector<64x256xf32>
    %5 = arith.addf %2, %4 : vector<64x256xf32>
    %6 = vector.extract_strided_slice %5 {offsets = [0, 0], sizes = [64, 128], strides = [1, 1]} : vector<64x256xf32> to vector<64x128xf32>
    %7 = vector.extract_strided_slice %5 {offsets = [0, 128], sizes = [64, 128], strides = [1, 1]} : vector<64x256xf32> to vector<64x128xf32>
    %cst_5 = arith.constant 5.000000e-01 : f32
    %8 = vector.broadcast %cst_5 : f32 to vector<64x128xf32>
    %9 = arith.mulf %8, %7 : vector<64x128xf32>
    %cst_6 = arith.constant 0.707106769 : f32
    %10 = vector.broadcast %cst_6 : f32 to vector<64x128xf32>
    %11 = arith.mulf %7, %10 : vector<64x128xf32>
    %12 = math.erf %11 : vector<64x128xf32>
    %cst_7 = arith.constant 1.000000e+00 : f32
    %13 = vector.broadcast %cst_7 : f32 to vector<64x128xf32>
    %14 = arith.addf %13, %12 : vector<64x128xf32>
    %15 = arith.mulf %9, %14 : vector<64x128xf32>
    %16 = arith.mulf %6, %15 : vector<64x128xf32>
    %c0_8 = arith.constant 0 : index
    %c0_9 = arith.constant 0 : index
    %17 = vector.load %arg5[%c0_8, %c0_9] : memref<64x128xf32, #tpu.memory_space<vmem>>, vector<64x128xf32>
    tpu.vector_store %arg5[%c0_8, %c0_9], %16 {strides = array<i32>} : memref<64x128xf32, #tpu.memory_space<vmem>>, vector<64x128xf32>,
    return
  }
  func.func @transform_0(%arg0: i32, %arg1: i32) -> (i32, i32) {
    %c0_i32 = arith.constant 0 : i32
    %c0_i32_0 = arith.constant 0 : i32
    return %arg1, %c0_i32 : i32, i32
  }
  func.func @transform_1(%arg0: i32, %arg1: i32) -> (i32, i32) {
    %c0_i32 = arith.constant 0 : i32
    %c0_i32_0 = arith.constant 0 : i32
    return %c0_i32, %arg0 : i32, i32
  }
  func.func @transform_2(%arg0: i32, %arg1: i32) -> (i32, i32) {
    %c0_i32 = arith.constant 0 : i32
    %c0_i32_0 = arith.constant 0 : i32
    return %c0_i32, %arg0 : i32, i32
  }
  func.func @transform_3(%arg0: i32, %arg1: i32) -> (i32, i32) {
    %c0_i32 = arith.constant 0 : i32
    return %arg1, %arg0 : i32, i32
  }
}

</mosaic_0001>

<llo_original>
// kernel: tpu_custom_call.1
$region0: #{tpu_custom_call.1}
  #allocation0 [shape = 'u32[]', space=smem, size = 0x4, offset = 0x4, fixed_abs, tag = 'smem constant byte address 0x4 - core index']
  #allocation1 [shape = 'u32[144,128]{1,0:T(1,128)}', space=vmem, size = 0x12000, scoped, tag = 'internal scratch']
  %s0 = inlined_call_operand.vmem [shape: f32[128,32], index: 0, kind: input, shape index: {}]
  %s1 = inlined_call_operand.vmem [shape: f32[32,256], index: 1, kind: input, shape index: {}]
  %s2 = inlined_call_operand.vmem [shape: f32[1,256], index: 2, kind: input, shape index: {}]
  %s3 = inlined_call_operand.hbm [shape: f32[128,128], index: 3, kind: output, shape index: {}]
  %s4 = sld [smem:[#allocation0]]
  $region45: #{tpu_custom_call.1} parent=0
    _
  %s6 = ssub.s32 1, %s4
  %s7 = scalar_select 0, %s6, %s4
  $region1: #{tpu_custom_call.1} parent=0
    #allocation2 [shape = 'u8[65536]{0}', space=vmem, size = 0x10000, scoped, tag = 'output window, operand 0']
    #allocation3 [shape = 's32[2]{0}', space=sflag, size = 0x8, scoped, tag = 'scoped memory for tpu_custom_call.1']
    %8 = vsyncpa [#allocation3], 0
    %s9 = scalar_lea.sflag [#allocation3], 1
    %10 = vsyncpa %s9, 0
    loop: start=0, step=1, limit=4
    $region2: #{tpu_custom_call.1} parent=1 // loop_pre_header
      _
    $region3: #{tpu_custom_call.1} parent=1 // loop_header
      %s12 = sphi 0, %s16
      %p13 = scmp.ge.s32.totalorder %s12, 4
      %s19 = sphi 0, %s31
      %s20 = sphi 0, %s27
      %s21 = sphi 0, %s19
      %s22 = sphi 0, %s20
      %s23 = sphi 0, %s21
      %s24 = sphi 0, %s22
      %s34 = sphi 0, %s36
      %s37 = sphi 0, %s34
      %s38 = sphi 0, %s37
      %s54 = sphi 0, %s38
      %s60 = sphi 0, %s62
      %s63 = sphi 0, %s60
      %s64 = sphi 0, %s63
      %s80 = sphi 0, %s64
      %s86 = sphi 0, %s88
      %s89 = sphi 0, %s86
      %s90 = sphi 0, %s89
      %s106 = sphi 0, %s90
      %s114 = sphi 0, %s116
      %s117 = sphi 0, %s114
      %s118 = sphi 0, %s117
      %s134 = sphi 0, %s118
    $region4: #{tpu_custom_call.1} parent=1 // loop_header_branch
      %15 = sbr.rel (%p13) target = $region8
    $region5: #{tpu_custom_call.1} parent=1 // loop_body
      %s17 = ssub.s32 %s12, 1
      %s18 = ssub.s32 %s12, 2
      %s25 = sadd.s32 1, %s20
      %p26 = scmp.ge.s32.totalorder %s25, 2
      %s27 = scalar_select %p26, 0, %s25
      %s28 = sadd.s32 1, %s19
      %s29 = scalar_select %p26, %s28, %s19
      %p30 = scmp.ge.s32.totalorder %s29, 1
      %s31 = scalar_select %p30, 0, %s29
      %s32 = ssub.s32 %s20, %s27
      %p33 = scmp.eq.s32.totalorder %s32, 0
      %s35 = sadd.s32 %s34, 1
      %s36 = scalar_select %p33, %s34, %s35
      %p39 = pneg %p33
      %p40 = scmp.eq.s32.totalorder %s12, 1
      %p41 = por %p39, %p40
      %p42 = scmp.ne.s32.totalorder %s34, %s37
      %p43 = scmp.eq.s32.totalorder %s12, 0
      %p44 = por %p42, %p43
      %p45 = scmp.ne.s32.totalorder %s34, %s37
      %p46 = scmp.eq.s32.totalorder %s17, 1
      %p47 = por %p45, %p46
      %p48 = scmp.ne.s32.totalorder %s37, %s38
      %p49 = scmp.eq.s32.totalorder %s17, 0
      %p50 = por %p48, %p49
      %p51 = scmp.ne.s32.totalorder %s37, %s38
      %p52 = scmp.eq.s32.totalorder %s18, 1
      %p53 = por %p51, %p52
      %p55 = scmp.ne.s32.totalorder %s38, %s54
      %p56 = scmp.eq.s32.totalorder %s18, 0
      %p57 = por %p55, %p56
      %s58 = ssub.s32 %s19, %s31
      %p59 = scmp.eq.s32.totalorder %s58, 0
      %s61 = sadd.s32 %s60, 1
      %s62 = scalar_select %p59, %s60, %s61
      %p65 = pneg %p59
      %p66 = scmp.eq.s32.totalorder %s12, 1
      %p67 = por %p65, %p66
      %p68 = scmp.ne.s32.totalorder %s60, %s63
      %p69 = scmp.eq.s32.totalorder %s12, 0
      %p70 = por %p68, %p69
      %p71 = scmp.ne.s32.totalorder %s60, %s63
      %p72 = scmp.eq.s32.totalorder %s17, 1
      %p73 = por %p71, %p72
      %p74 = scmp.ne.s32.totalorder %s63, %s64
      %p75 = scmp.eq.s32.totalorder %s17, 0
      %p76 = por %p74, %p75
      %p77 = scmp.ne.s32.totalorder %s63, %s64
      %p78 = scmp.eq.s32.totalorder %s18, 1
      %p79 = por %p77, %p78
      %p81 = scmp.ne.s32.totalorder %s64, %s80
      %p82 = scmp.eq.s32.totalorder %s18, 0
      %p83 = por %p81, %p82
      %s84 = ssub.s32 %s19, %s31
      %p85 = scmp.eq.s32.totalorder %s84, 0
      %s87 = sadd.s32 %s86, 1
      %s88 = scalar_select %p85, %s86, %s87
      %p91 = pneg %p85
      %p92 = scmp.eq.s32.totalorder %s12, 1
      %p93 = por %p91, %p92
      %p94 = scmp.ne.s32.totalorder %s86, %s89
      %p95 = scmp.eq.s32.totalorder %s12, 0
      %p96 = por %p94, %p95
      %p97 = scmp.ne.s32.totalorder %s86, %s89
      %p98 = scmp.eq.s32.totalorder %s17, 1
      %p99 = por %p97, %p98
      %p100 = scmp.ne.s32.totalorder %s89, %s90
      %p101 = scmp.eq.s32.totalorder %s17, 0
      %p102 = por %p100, %p101
      %p103 = scmp.ne.s32.totalorder %s89, %s90
      %p104 = scmp.eq.s32.totalorder %s18, 1
      %p105 = por %p103, %p104
      %p107 = scmp.ne.s32.totalorder %s90, %s106
      %p108 = scmp.eq.s32.totalorder %s18, 0
      %p109 = por %p107, %p108
      %s110 = ssub.s32 %s20, %s27
      %s111 = ssub.s32 %s19, %s31
      %s112 = sor.u32 %s110, %s111
      %p113 = scmp.eq.s32.totalorder %s112, 0
      %s115 = sadd.s32 %s114, 1
      %s116 = scalar_select %p113, %s114, %s115
      %p119 = pneg %p113
      %p120 = scmp.eq.s32.totalorder %s12, 1
      %p121 = por %p119, %p120
      %p122 = scmp.ne.s32.totalorder %s114, %s117
      %p123 = scmp.eq.s32.totalorder %s12, 0
      %p124 = por %p122, %p123
      %p125 = scmp.ne.s32.totalorder %s114, %s117
      %p126 = scmp.eq.s32.totalorder %s17, 1
      %p127 = por %p125, %p126
      %p128 = scmp.ne.s32.totalorder %s117, %s118
      %p129 = scmp.eq.s32.totalorder %s17, 0
      %p130 = por %p128, %p129
      %p131 = scmp.ne.s32.totalorder %s117, %s118
      %p132 = scmp.eq.s32.totalorder %s18, 1
      %p133 = por %p131, %p132
      %p135 = scmp.ne.s32.totalorder %s118, %s134
      %p136 = scmp.eq.s32.totalorder %s18, 0
      %p137 = por %p135, %p136
      %p138 = scmp.le.s32.totalorder 1, %s12
      %p139 = scmp.lt.s32.totalorder %s12, 3
      %p140 = pnand %p138, %p139
      %p141 = pneg %p140
      // Predicated region
      $region9: #{tpu_custom_call.1} parent=5 // pred_check
        _
      $region10: #{tpu_custom_call.1} parent=5 // pred_check_branch
        %143 = sbr.rel (%p140) target = $region12
      $region11: #{tpu_custom_call.1} parent=5 // pred_region
        %s144 = ssub.s32 %s12, 1
        // Predicated region
        $region13: #{tpu_custom_call.1} parent=11 // pred_check
          %p145 = pneg %p76
        $region14: #{tpu_custom_call.1} parent=11 // pred_check_branch
          %147 = sbr.rel (%p145) target = $region16
        $region15: #{tpu_custom_call.1} parent=11 // pred_region
          %s148 = smul.u32 2, %s21
          %p149 = scmp.lt.s32.totalorder %s148, 1
          %s150 = scalar_select %p149, %s148, 1
          %s151 = smul.addr %s150, 8
          %s152 = scalar_lea.vmem %s1, %s151
          %s153 = smul.u32 2, %s21
        $region16: #{tpu_custom_call.1} parent=11 // pred_fallthru
          _
        // Predicated region
        $region17: #{tpu_custom_call.1} parent=11 // pred_check
          %p154 = pneg %p102
        $region18: #{tpu_custom_call.1} parent=11 // pred_check_branch
          %156 = sbr.rel (%p154) target = $region20
        $region19: #{tpu_custom_call.1} parent=11 // pred_region
          %s157 = smul.u32 2, %s21
          %p158 = scmp.lt.s32.totalorder %s157, 1
          %s159 = scalar_select %p158, %s157, 1
          %s160 = scalar_lea.vmem %s2, %s159
          %s161 = smul.u32 2, %s21
        $region20: #{tpu_custom_call.1} parent=11 // pred_fallthru
          _
      $region12: #{tpu_custom_call.1} parent=5 // pred_fallthru
        _
      %p162 = scmp.lt.s32.totalorder %s12, 2
      // Predicated region
      $region21: #{tpu_custom_call.1} parent=5 // pred_check
        %p163 = pneg %p162
      $region22: #{tpu_custom_call.1} parent=5 // pred_check_branch
        %165 = sbr.rel (%p163) target = $region24
      $region23: #{tpu_custom_call.1} parent=5 // pred_region
        // Predicated region
        $region25: #{tpu_custom_call.1} parent=23 // pred_check
          %p166 = pneg %p44
        $region26: #{tpu_custom_call.1} parent=23 // pred_check_branch
          %168 = sbr.rel (%p166) target = $region28
        $region27: #{tpu_custom_call.1} parent=23 // pred_region
          %s169 = smul.u32 8, %s20
          %p170 = scmp.lt.s32.totalorder %s169, 15
          %s171 = scalar_select %p170, %s169, 15
          %s172 = smul.addr %s171, 8
          %s173 = scalar_lea.vmem %s0, %s172
          %s174 = smul.u32 8, %s20
        $region28: #{tpu_custom_call.1} parent=23 // pred_fallthru
          _
      $region24: #{tpu_custom_call.1} parent=5 // pred_fallthru
        _
      %p175 = scmp.le.s32.totalorder 1, %s12
      %p176 = scmp.lt.s32.totalorder %s12, 3
      %p177 = pnand %p175, %p176
      %p178 = pneg %p177
      // Predicated region
      $region29: #{tpu_custom_call.1} parent=5 // pred_check
        _
      $region30: #{tpu_custom_call.1} parent=5 // pred_check_branch
        %180 = sbr.rel (%p177) target = $region32
      $region31: #{tpu_custom_call.1} parent=5 // pred_region
        %s181 = ssub.s32 %s12, 1
        %s182 = smul.u32 8, %s22
        %p183 = scmp.lt.s32.totalorder %s182, 15
        %s184 = scalar_select %p183, %s182, 15
        %s185 = smul.addr %s184, 8
        %s186 = scalar_lea.vmem %s0, %s185
        %p187 = pneg %p50
        %p188 = pneg %p47
        %s189 = smul.u32 2, %s21
        %p190 = scmp.lt.s32.totalorder %s189, 1
        %s191 = scalar_select %p190, %s189, 1
        %s192 = smul.addr %s191, 8
        %s193 = scalar_lea.vmem %s1, %s192
        %p194 = pneg %p76
        %p195 = pneg %p73
        %s196 = smul.u32 2, %s21
        %p197 = scmp.lt.s32.totalorder %s196, 1
        %s198 = scalar_select %p197, %s196, 1
        %s199 = scalar_lea.vmem %s2, %s198
        %p200 = pneg %p102
        %p201 = pneg %p99
        %p202 = pneg %p130
        %p203 = pneg %p127
        %s204 = sand.u32 %s117, 1
        %s205 = scalar_lea.sflag [#allocation3], %s204
        %s206 = sand.u32 %s117, 1
        %s207 = smul.addr %s206, 64
        %s208 = scalar_lea.vmem [#allocation2], %s207
        %s209 = smul.u32 8, %s22
        %p210 = scmp.lt.s32.totalorder %s209, 15
        %s211 = scalar_select %p210, %s209, 15
        %s212 = smul.addr %s211, 8
        %s213 = scalar_lea.vmem %s0, %s212
        %s214 = smul.u32 8, %s22
        %s215 = smul.u32 2, %s21
        %p216 = scmp.lt.s32.totalorder %s215, 1
        %s217 = scalar_select %p216, %s215, 1
        %s218 = smul.addr %s217, 8
        %s219 = scalar_lea.vmem %s1, %s218
        %s220 = smul.u32 2, %s21
        %s221 = smul.u32 2, %s21
        %p222 = scmp.lt.s32.totalorder %s221, 1
        %s223 = scalar_select %p222, %s221, 1
        %s224 = scalar_lea.vmem %s2, %s223
        %s225 = smul.u32 2, %s21
        %s226 = smul.u32 8, %s22
        %v227 = vld [vmem:[%s213] sm:$0xff]
        %v228 = vld [vmem:[%s213 + $0x8] sm:$0xff]
        %v229 = vld [vmem:[%s213 + $0x10] sm:$0xff]
        %v230 = vld [vmem:[%s213 + $0x18] sm:$0xff]
        %v231 = vld [vmem:[%s213 + $0x20] sm:$0xff]
        %v232 = vld [vmem:[%s213 + $0x28] sm:$0xff]
        %v233 = vld [vmem:[%s213 + $0x30] sm:$0xff]
        %v234 = vld [vmem:[%s213 + $0x38] sm:$0xff]
        %v235 = vld [vmem:[%s219] sm:$0xff]
        %v236 = vld [vmem:[%s219 + $0x8] sm:$0xff]
        %v237 = vld [vmem:[%s219 + $0x10] sm:$0xff]
        %v238 = vld [vmem:[%s219 + $0x18] sm:$0xff]
        %v239 = vld [vmem:[%s219 + $0x20] sm:$0xff]
        %v240 = vld [vmem:[%s219 + $0x28] sm:$0xff]
        %v241 = vld [vmem:[%s219 + $0x30] sm:$0xff]
        %v242 = vld [vmem:[%s219 + $0x38] sm:$0xff]
        %v243 = vld [vmem:[%s224] sm:$0x3]
        %v245 = vlaneseq
        %v246 = vshrl.u32 %v245, 7
        %v247 = vsub.s32 0, %v246
        %v248 = vrot.slane %v243, %v247
        %v249 = vlaneseq
        %v250 = vshrl.u32 %v249, 7
        %v251 = vsub.s32 1, %v250
        %v252 = vrot.slane %v243, %v251
        %vm255 = vcmask 261120
        %v257 = vsel %vm255, %v227, 0
        %v260 = vsel %vm255, %v228, 0
        %v263 = vsel %vm255, %v229, 0
        %v266 = vsel %vm255, %v230, 0
        %v269 = vsel %vm255, %v231, 0
        %v272 = vsel %vm255, %v232, 0
        %v275 = vsel %vm255, %v233, 0
        %v278 = vsel %vm255, %v234, 0
        %280 = vmatprep.subr.mxu0 %v236
        %281 = vmatpush1.msra.mxu0 %v235
        %282 = vmatprep.subr.mxu0 %v238
        %283 = vmatpush1.msra.mxu0 %v237
        %284 = vmatprep.subr.mxu0 %v240
        %285 = vmatpush1.msra.mxu0 %v239
        %286 = vmatprep.subr.mxu0 %v242
        %287 = vmatpush1.msra.mxu0 %v241
        %288 = vmatprep.subr.mxu0 0.0
        %289 = vmatpush1.msra.mxu0 0.0
        %290 = vmatprep.subr.mxu0 0.0
        %291 = vmatpush1.msra.mxu0 0.0
        %292 = vmatprep.subr.mxu0 0.0
        %293 = vmatpush1.msra.mxu0 0.0
        %294 = vmatprep.subr.mxu0 0.0
        %295 = vmatpush1.msra.mxu0 0.0
        %296 = vmatprep.subr.mxu0 0.0
        %297 = vmatpush1.msra.mxu0 0.0
        %298 = vmatprep.subr.mxu0 0.0
        %299 = vmatpush1.msra.mxu0 0.0
        %300 = vmatprep.subr.mxu0 0.0
        %301 = vmatpush1.msra.mxu0 0.0
        %302 = vmatprep.subr.mxu0 0.0
        %303 = vmatpush1.msra.mxu0 0.0
        %304 = vmatprep.subr.mxu0 0.0
        %305 = vmatpush1.msra.mxu0 0.0
        %306 = vmatprep.subr.mxu0 0.0
        %307 = vmatpush1.msra.mxu0 0.0
        %308 = vmatprep.subr.mxu0 0.0
        %309 = vmatpush1.msra.mxu0 0.0
        %310 = vmatprep.subr.mxu0 0.0
        %311 = vmatpush1.msra.mxu0 0.0
        %312 = vmatprep.subr.mxu0 0.0
        %313 = vmatpush1.msra.mxu0 0.0
        %314 = vmatprep.subr.mxu0 0.0
        %315 = vmatpush1.msra.mxu0 0.0
        %316 = vmatprep.subr.mxu0 0.0
        %317 = vmatpush1.msra.mxu0 0.0
        %318 = vmatprep.subr.mxu0 0.0
        %319 = vmatpush1.msra.mxu0 0.0
        %320 = vmatprep.subr.mxu0 0.0
        %321 = vmatpush1.msra.mxu0 0.0
        %322 = vmatprep.subr.mxu0 0.0
        %323 = vmatpush1.msra.mxu0 0.0
        %324 = vmatprep.subr.mxu0 0.0
        %325 = vmatpush1.msra.mxu0 0.0
        %326 = vmatprep.subr.mxu0 0.0
        %327 = vmatpush1.msra.mxu0 0.0
        %328 = vmatprep.subr.mxu0 0.0
        %329 = vmatpush1.msra.mxu0 0.0
        %330 = vmatprep.subr.mxu0 0.0
        %331 = vmatpush1.msra.mxu0 0.0
        %332 = vmatprep.subr.mxu0 0.0
        %333 = vmatpush1.msra.mxu0 0.0
        %334 = vmatprep.subr.mxu0 0.0
        %335 = vmatpush1.msra.mxu0 0.0
        %336 = vmatprep.subr.mxu0 0.0
        %337 = vmatpush1.msra.mxu0 0.0
        %338 = vmatprep.subr.mxu0 0.0
        %339 = vmatpush1.msra.mxu0 0.0
        %340 = vmatprep.subr.mxu0 0.0
        %341 = vmatpush1.msra.mxu0 0.0
        %342 = vmatprep.subr.mxu0 0.0
        %343 = vmatpush1.msra.mxu0 0.0
        %344 = vmatprep.mubr.f32.mxu0 0.0
        %345 = vmatmul.mubr.f32.gmra.mrb[0].mxu0 %v257
        %v346 = vpop.f32.mrb[0].mxu0
        %v347 = vadd.f32 %v248, %v346
        %v348 = vpop.f32.mrb[0].mxu0
        %v349 = vadd.f32 %v252, %v348
        %350 = vmatprep.mubr.f32.mxu0 0.0
        %351 = vmatmul.mubr.f32.gmra.mrb[0].mxu0 %v260
        %v352 = vpop.f32.mrb[0].mxu0
        %v353 = vadd.f32 %v248, %v352
        %v354 = vpop.f32.mrb[0].mxu0
        %v355 = vadd.f32 %v252, %v354
        %356 = vmatprep.mubr.f32.mxu0 0.0
        %357 = vmatmul.mubr.f32.gmra.mrb[0].mxu0 %v263
        %v358 = vpop.f32.mrb[0].mxu0
        %v359 = vadd.f32 %v248, %v358
        %v360 = vpop.f32.mrb[0].mxu0
        %v361 = vadd.f32 %v252, %v360
        %362 = vmatprep.mubr.f32.mxu0 0.0
        %363 = vmatmul.mubr.f32.gmra.mrb[0].mxu0 %v266
        %v364 = vpop.f32.mrb[0].mxu0
        %v365 = vadd.f32 %v248, %v364
        %v366 = vpop.f32.mrb[0].mxu0
        %v367 = vadd.f32 %v252, %v366
        %368 = vmatprep.mubr.f32.mxu0 0.0
        %369 = vmatmul.mubr.f32.gmra.mrb[0].mxu0 %v269
        %v370 = vpop.f32.mrb[0].mxu0
        %v371 = vadd.f32 %v248, %v370
        %v372 = vpop.f32.mrb[0].mxu0
        %v373 = vadd.f32 %v252, %v372
        %374 = vmatprep.mubr.f32.mxu0 0.0
        %375 = vmatmul.mubr.f32.gmra.mrb[0].mxu0 %v272
        %v376 = vpop.f32.mrb[0].mxu0
        %v377 = vadd.f32 %v248, %v376
        %v378 = vpop.f32.mrb[0].mxu0
        %v379 = vadd.f32 %v252, %v378
        %380 = vmatprep.mubr.f32.mxu0 0.0
        %381 = vmatmul.mubr.f32.gmra.mrb[0].mxu0 %v275
        %v382 = vpop.f32.mrb[0].mxu0
        %v383 = vadd.f32 %v248, %v382
        %v384 = vpop.f32.mrb[0].mxu0
        %v385 = vadd.f32 %v252, %v384
        %386 = vmatprep.mubr.f32.mxu0 0.0
        %387 = vmatmul.mubr.f32.gmra.mrb[0].mxu0 %v278
        %v388 = vpop.f32.mrb[0].mxu0
        %v389 = vadd.f32 %v248, %v388
        %v390 = vpop.f32.mrb[0].mxu0
        %v391 = vadd.f32 %v252, %v390
        %392 = vdwg.mxu0
        %v393 = vmul.f32 %v349, 0.5
        %v394 = vmul.f32 %v355, 0.5
        %v395 = vmul.f32 %v361, 0.5
        %v396 = vmul.f32 %v367, 0.5
        %v397 = vmul.f32 %v373, 0.5
        %v398 = vmul.f32 %v379, 0.5
        %v399 = vmul.f32 %v385, 0.5
        %v400 = vmul.f32 %v391, 0.5
        %v401 = vmul.f32 %v349, 0.70710677
        %v402 = vmul.f32 %v355, 0.70710677
        %v403 = vmul.f32 %v361, 0.70710677
        %v404 = vmul.f32 %v367, 0.70710677
        %v405 = vmul.f32 %v373, 0.70710677
        %v406 = vmul.f32 %v379, 0.70710677
        %v407 = vmul.f32 %v385, 0.70710677
        %v408 = vmul.f32 %v391, 0.70710677
        %v409 = verf.f32.pop %v401
        %v410 = verf.f32.pop %v402
        %v411 = verf.f32.pop %v403
        %v412 = verf.f32.pop %v404
        %v413 = verf.f32.pop %v405
        %v414 = verf.f32.pop %v406
        %v415 = verf.f32.pop %v407
        %v416 = verf.f32.pop %v408
        %v417 = vadd.f32 %v409, 1.0
        %v418 = vadd.f32 %v410, 1.0
        %v419 = vadd.f32 %v411, 1.0
        %v420 = vadd.f32 %v412, 1.0
        %v421 = vadd.f32 %v413, 1.0
        %v422 = vadd.f32 %v414, 1.0
        %v423 = vadd.f32 %v415, 1.0
        %v424 = vadd.f32 %v416, 1.0
        %v425 = vmul.f32 %v393, %v417
        %v426 = vmul.f32 %v394, %v418
        %v427 = vmul.f32 %v395, %v419
        %v428 = vmul.f32 %v396, %v420
        %v429 = vmul.f32 %v397, %v421
        %v430 = vmul.f32 %v398, %v422
        %v431 = vmul.f32 %v399, %v423
        %v432 = vmul.f32 %v400, %v424
        %v433 = vmul.f32 %v347, %v425
        %v434 = vmul.f32 %v353, %v426
        %v435 = vmul.f32 %v359, %v427
        %v436 = vmul.f32 %v365, %v428
        %v437 = vmul.f32 %v371, %v429
        %v438 = vmul.f32 %v377, %v430
        %v439 = vmul.f32 %v383, %v431
        %v440 = vmul.f32 %v389, %v432
        %441 = vst [vmem:[%s208] sm:$0xff] %v433
        %442 = vst [vmem:[%s208 + $0x8] sm:$0xff] %v434
        %443 = vst [vmem:[%s208 + $0x10] sm:$0xff] %v435
        %444 = vst [vmem:[%s208 + $0x18] sm:$0xff] %v436
        %445 = vst [vmem:[%s208 + $0x20] sm:$0xff] %v437
        %446 = vst [vmem:[%s208 + $0x28] sm:$0xff] %v438
        %447 = vst [vmem:[%s208 + $0x30] sm:$0xff] %v439
        %448 = vst [vmem:[%s208 + $0x38] sm:$0xff] %v440
        %s449 = sand.u32 %s117, 1
        %s450 = scalar_lea.sflag [#allocation3], %s449
        %s451 = sand.u32 %s117, 1
        %s452 = smul.addr %s451, 64
        %s453 = scalar_lea.vmem [#allocation2], %s452
        // Predicated region
        $region33: #{tpu_custom_call.1} parent=31 // pred_check
          %p454 = pneg %p127
        $region34: #{tpu_custom_call.1} parent=31 // pred_check_branch
          %456 = sbr.rel (%p454) target = $region36
        $region35: #{tpu_custom_call.1} parent=31 // pred_region
          %s457 = smul.u32 8, %s22
          %s459 = ssub.s32 1024, 1024
          %460 = vsyncadd %s450, %s459
          %s461 = sadd.s32 %s21, %s457
          %s462 = smul.addr %s461, 128
          %s463 = scalar_lea.hbm %s3, %s462
          %s464 = sshll.u32 %s453, 4
          %s465 = int_to_ptr.vmem [resolvable:$true] %s464
          %470 = dma.vmem_to_hbm [thread:$0]  %s465, 1024, %s463, %s450, 128, 128, 8
        $region36: #{tpu_custom_call.1} parent=31 // pred_fallthru
          _
      $region32: #{tpu_custom_call.1} parent=5 // pred_fallthru
        _
      %p471 = scmp.le.s32.totalorder 2, %s12
      // Predicated region
      $region37: #{tpu_custom_call.1} parent=5 // pred_check
        %p472 = pneg %p471
      $region38: #{tpu_custom_call.1} parent=5 // pred_check_branch
        %474 = sbr.rel (%p472) target = $region40
      $region39: #{tpu_custom_call.1} parent=5 // pred_region
        %s475 = ssub.s32 %s12, 2
        // Predicated region
        $region41: #{tpu_custom_call.1} parent=39 // pred_check
          %p476 = pneg %p133
        $region42: #{tpu_custom_call.1} parent=39 // pred_check_branch
          %478 = sbr.rel (%p476) target = $region44
        $region43: #{tpu_custom_call.1} parent=39 // pred_region
          %s479 = sand.u32 %s118, 1
          %s480 = scalar_lea.sflag [#allocation3], %s479
          %s481 = sand.u32 %s118, 1
          %s482 = smul.addr %s481, 64
          %s483 = scalar_lea.vmem [#allocation2], %s482
          %484 = dma.done %s480, 1024
        $region44: #{tpu_custom_call.1} parent=39 // pred_fallthru
          _
      $region40: #{tpu_custom_call.1} parent=5 // pred_fallthru
        _
    $region6: #{tpu_custom_call.1} parent=1 // loop_footer
      %s16 = sadd.s32 1, %s12
    $region7: #{tpu_custom_call.1} parent=1 // loop_footer_branch
      %11 = sbr.rel target = $region3
    $region8: #{tpu_custom_call.1} parent=1 // loop_exit
      _
    %485 = vsyncpa [#allocation3], 1
    %s486 = scalar_lea.sflag [#allocation3], 1
    %487 = vsyncpa %s486, 1

</llo_original>
